<compile_context>
chip_gen: v7x
topology: tpu7x:2x2x1
jax: 0.10.0
libtpu: 0.0.40
codegen_flags: <defaults>
</compile_context>

<pallas_src>
import jax
import jax.numpy as jnp
from jax.experimental import pallas as pl
from jax.experimental.pallas import tpu as pltpu


OUT_FEATURES = 64      # nn.Linear(768, 64)
OUT_PAD = 128          # lane-dense padded head width (zero columns sliced off outside)


def focal_teacher_head_kernel(x_ref, w_ref, b_ref, o_ref):
    # x_ref: (TB, HW*C) flattened backbone features, native dtype (f32 or bf16)
    # w_ref: (C, OUT_PAD) f32, pre-transposed and pre-scaled by 1/HW (folds the avg-pool divide)
    # b_ref: (1, OUT_PAD) f32
    # o_ref: (TB, OUT_PAD) f32
    c = w_ref.shape[0]
    hw = x_ref.shape[1] // c

    # AdaptiveAvgPool1d(1) == mean over the HW spatial positions. Done as HW statically
    # unrolled, 128-lane-aligned slice loads accumulated in f32 (never upcast the full tile).
    acc = x_ref[:, 0:c].astype(jnp.float32)                       # (TB, C) f32
    for k in range(1, hw):
        acc = acc + x_ref[:, k * c:(k + 1) * c].astype(jnp.float32)

    # Linear(768, 64) on the MXU; 1/HW already folded into w.
    o_ref[...] = (
        jnp.dot(acc, w_ref[...], preferred_element_type=jnp.float32)
        + b_ref[...]
    )


def prepare_focal_teacher_params(weight, bias, hw):
    """One-time parameter prep (hoisted out of the per-call hot path).

    weight: (OUT, C) torch layout; bias: (OUT,).
    Returns w: (C, OUT_PAD) f32 scaled by 1/hw, b: (1, OUT_PAD) f32 (zero-padded to 128 lanes).
    """
    out, _ = weight.shape
    w = jnp.transpose(weight).astype(jnp.float32) / float(hw)   # (C, OUT), avg-pool scale folded in
    b = bias.astype(jnp.float32).reshape(1, out)
    w = jnp.pad(w, ((0, 0), (0, OUT_PAD - out)))
    b = jnp.pad(b, ((0, 0), (0, OUT_PAD - out)))
    return w, b


def _tpu_vmem_capacity_bytes():
    try:
        return int(pltpu.get_tpu_info().vmem_capacity_bytes)
    except Exception:
        return 64 * 1024 * 1024     # conservative fallback (assume v7x-sized VMEM)


def _per_buffer_budget(vmem_capacity):
    # v7x: 64 MiB physical VMEM -> keep 2 x-buffers + outputs + params under ~48 MiB.
    # v5e/v6e: 128 MiB physical -> larger tiles amortize the ~0.35 us/step pipeline overhead.
    if vmem_capacity <= 64 * 1024 * 1024:
        return 20 * 1024 * 1024
    return 12 * 1024 * 1024


def _pick_batch_tile(batch, row_bytes, sub, budget):
    """Pick a batch tile TB (multiple of `sub`) such that the grid has an even number (>=2)
    of steps whenever batch allows it, so v7x's two TensorCores split the work evenly, while
    each double-buffered x tile stays within the per-buffer VMEM budget."""
    cap = max(sub, (budget // row_bytes) // sub * sub)
    if batch <= sub:
        return batch                    # full array dim -> always a legal block shape
    steps = 2
    while True:
        tb = (batch + steps - 1) // steps
        tb = ((tb + sub - 1) // sub) * sub
        if tb <= cap:
            return tb
        steps += 2                      # keep the grid count even for the 2-TC split


def focal_teacher_head(x_feat, w_prepped, b_prepped):
    """x_feat: (B, H, W, C) channels-last backbone features (f32 or bf16, native dtype kept)."""
    B, H, W, C = x_feat.shape
    HW = H * W
    x = x_feat.reshape(B, HW * C)       # contiguous 2D layout: lane-dense, no sublane padding

    itemsize = jnp.dtype(x.dtype).itemsize
    sub = 8 if itemsize >= 4 else 32 // itemsize      # sublane multiple: 8 (f32) / 16 (bf16)
    vmem_capacity = _tpu_vmem_capacity_bytes()
    row_bytes = HW * C * itemsize
    TB = _pick_batch_tile(B, row_bytes, sub, _per_buffer_budget(vmem_capacity))
    grid = (pl.cdiv(B, TB),)

    # Scoped VMEM: 2 x-buffers + 2 out-buffers + (double-buffered) resident params + slack.
    footprint = 2 * TB * row_bytes + 2 * TB * OUT_PAD * 4 + 2 * (C + 1) * OUT_PAD * 4
    vmem_limit = max(16 << 20, min(footprint + (8 << 20), 48 << 20))

    out = pl.pallas_call(
        focal_teacher_head_kernel,
        out_shape=jax.ShapeDtypeStruct((B, OUT_PAD), jnp.float32),
        grid=grid,
        in_specs=[
            pl.BlockSpec((TB, HW * C), lambda i: (i, 0)),
            pl.BlockSpec((C, OUT_PAD), lambda i: (0, 0)),    # constant block -> stays resident
            pl.BlockSpec((1, OUT_PAD), lambda i: (0, 0)),    # constant block -> stays resident
        ],
        out_specs=pl.BlockSpec((TB, OUT_PAD), lambda i: (i, 0)),
        compiler_params=pltpu.CompilerParams(
            dimension_semantics=("parallel",),   # independent batch tiles; shards over v7x's 2 TCs
            vmem_limit_bytes=int(vmem_limit),
        ),
    )(x, w_prepped, b_prepped)
    return out[:, :OUT_FEATURES]


def _reference(x_feat, weight, bias):
    B, H, W, C = x_feat.shape
    x = x_feat.reshape(B, H * W, C).astype(jnp.float32)
    pooled = jnp.mean(x, axis=1)                          # AdaptiveAvgPool1d(1)
    return (
        jnp.dot(pooled, jnp.transpose(weight).astype(jnp.float32),
                precision=jax.lax.Precision.HIGHEST)
        + bias.astype(jnp.float32)
    )


if __name__ == "__main__":
    key = jax.random.PRNGKey(0)
    k_x, k_w, k_b, k_x2 = jax.random.split(key, 4)

    # Final focalnet_tiny stage is (B, 7, 7, 768); Linear(768, 64).
    H, W, C, OUT = 7, 7, 768, OUT_FEATURES
    HW = H * W

    # Deterministic parameter init (PyTorch nn.Linear default: U(-1/sqrt(C), 1/sqrt(C))).
    bound = 1.0 / (C ** 0.5)
    weight = jax.random.uniform(k_w, (OUT, C), minval=-bound, maxval=bound, dtype=jnp.float32)
    bias = jax.random.uniform(k_b, (OUT,), minval=-bound, maxval=bound, dtype=jnp.float32)

    # One-time parameter prep (transpose + 1/HW fold + lane padding), outside the hot path.
    w_prep, b_prep = prepare_focal_teacher_params(weight, bias, HW)

    # Tolerances are loose enough to absorb MXU f32-pass differences between the in-kernel
    # dot and the XLA reference; real structural bugs produce errors orders of magnitude larger.
    TOL_F32 = dict(atol=1e-2, rtol=1e-2)
    TOL_BF16 = dict(atol=3e-2, rtol=3e-2)

    # Small forward-consistency check: B=2 (single full-batch block).
    B = 2
    x_feat = jax.random.normal(k_x, (B, H, W, C), dtype=jnp.float32)
    out = jax.block_until_ready(focal_teacher_head(x_feat, w_prep, b_prep))
    ref = _reference(x_feat, weight, bias)
    assert out.shape == (B, OUT)
    assert jnp.allclose(out, ref, **TOL_F32)

    # Larger batch: exercises the multi-tile pipelined path with an even 2-way grid split.
    B2 = 96
    x_feat2 = jax.random.normal(k_x2, (B2, H, W, C), dtype=jnp.float32)
    out2 = jax.block_until_ready(focal_teacher_head(x_feat2, w_prep, b_prep))
    ref2 = _reference(x_feat2, weight, bias)
    assert out2.shape == (B2, OUT)
    assert jnp.allclose(out2, ref2, **TOL_F32)

    # bf16 backbone features (the intended production dtype: halves HBM traffic).
    x_feat3 = x_feat2.astype(jnp.bfloat16)
    out3 = jax.block_until_ready(focal_teacher_head(x_feat3, w_prep, b_prep))
    ref3 = _reference(x_feat3, weight, bias)
    assert out3.shape == (B2, OUT)
    assert jnp.allclose(out3, ref3, **TOL_BF16)

    print("KERNEL_OK")
</pallas_src>

<mosaic_0001>
module attributes {stable_mosaic.version = 11 : i64} {
  func.func @focal_teacher_head_kernel(%arg0: i32, %arg1: memref<2x37632xf32, #tpu.memory_space<vmem>>, %arg2: memref<768x128xf32, #tpu.memory_space<vmem>>, %arg3: memref<1x128xf32, #tpu.memory_space<vmem>>, %arg4: memref<2x128xf32, #tpu.memory_space<vmem>>) attributes {dimension_semantics = [#tpu.dimension_semantics<parallel>], iteration_bounds = array<i64: 1>, scalar_prefetch = 0 : i64, scratch_operands = 0 : i64, tpu.core_type = #tpu.core_type<tc>, window_params = [{transform_indices = @transform_0, window_bounds = array<i64: 2, 37632>}, {pipeline_mode = #tpu.pipeline_mode<synchronous>, transform_indices = @transform_1, window_bounds = array<i64: 768, 128>}, {pipeline_mode = #tpu.pipeline_mode<synchronous>, transform_indices = @transform_2, window_bounds = array<i64: 1, 128>}, {transform_indices = @transform_3, window_bounds = array<i64: 2, 128>}]} {
    %c0 = arith.constant 0 : index
    %c0_0 = arith.constant 0 : index
    %0 = vector.load %arg1[%c0, %c0_0] : memref<2x37632xf32, #tpu.memory_space<vmem>>, vector<2x768xf32>
    %c0_1 = arith.constant 0 : index
    %c768 = arith.constant 768 : index
    %1 = vector.load %arg1[%c0_1, %c768] : memref<2x37632xf32, #tpu.memory_space<vmem>>, vector<2x768xf32>
    %2 = arith.addf %0, %1 : vector<2x768xf32>
    %c0_2 = arith.constant 0 : index
    %c1536 = arith.constant 1536 : index
    %3 = vector.load %arg1[%c0_2, %c1536] : memref<2x37632xf32, #tpu.memory_space<vmem>>, vector<2x768xf32>
    %4 = arith.addf %2, %3 : vector<2x768xf32>
    %c0_3 = arith.constant 0 : index
    %c2304 = arith.constant 2304 : index
    %5 = vector.load %arg1[%c0_3, %c2304] : memref<2x37632xf32, #tpu.memory_space<vmem>>, vector<2x768xf32>
    %6 = arith.addf %4, %5 : vector<2x768xf32>
    %c0_4 = arith.constant 0 : index
    %c3072 = arith.constant 3072 : index
    %7 = vector.load %arg1[%c0_4, %c3072] : memref<2x37632xf32, #tpu.memory_space<vmem>>, vector<2x768xf32>
    %8 = arith.addf %6, %7 : vector<2x768xf32>
    %c0_5 = arith.constant 0 : index
    %c3840 = arith.constant 3840 : index
    %9 = vector.load %arg1[%c0_5, %c3840] : memref<2x37632xf32, #tpu.memory_space<vmem>>, vector<2x768xf32>
    %10 = arith.addf %8, %9 : vector<2x768xf32>
    %c0_6 = arith.constant 0 : index
    %c4608 = arith.constant 4608 : index
    %11 = vector.load %arg1[%c0_6, %c4608] : memref<2x37632xf32, #tpu.memory_space<vmem>>, vector<2x768xf32>
    %12 = arith.addf %10, %11 : vector<2x768xf32>
    %c0_7 = arith.constant 0 : index
    %c5376 = arith.constant 5376 : index
    %13 = vector.load %arg1[%c0_7, %c5376] : memref<2x37632xf32, #tpu.memory_space<vmem>>, vector<2x768xf32>
    %14 = arith.addf %12, %13 : vector<2x768xf32>
    %c0_8 = arith.constant 0 : index
    %c6144 = arith.constant 6144 : index
    %15 = vector.load %arg1[%c0_8, %c6144] : memref<2x37632xf32, #tpu.memory_space<vmem>>, vector<2x768xf32>
    %16 = arith.addf %14, %15 : vector<2x768xf32>
    %c0_9 = arith.constant 0 : index
    %c6912 = arith.constant 6912 : index
    %17 = vector.load %arg1[%c0_9, %c6912] : memref<2x37632xf32, #tpu.memory_space<vmem>>, vector<2x768xf32>
    %18 = arith.addf %16, %17 : vector<2x768xf32>
    %c0_10 = arith.constant 0 : index
    %c7680 = arith.constant 7680 : index
    %19 = vector.load %arg1[%c0_10, %c7680] : memref<2x37632xf32, #tpu.memory_space<vmem>>, vector<2x768xf32>
    %20 = arith.addf %18, %19 : vector<2x768xf32>
    %c0_11 = arith.constant 0 : index
    %c8448 = arith.constant 8448 : index
    %21 = vector.load %arg1[%c0_11, %c8448] : memref<2x37632xf32, #tpu.memory_space<vmem>>, vector<2x768xf32>
    %22 = arith.addf %20, %21 : vector<2x768xf32>
    %c0_12 = arith.constant 0 : index
    %c9216 = arith.constant 9216 : index
    %23 = vector.load %arg1[%c0_12, %c9216] : memref<2x37632xf32, #tpu.memory_space<vmem>>, vector<2x768xf32>
    %24 = arith.addf %22, %23 : vector<2x768xf32>
    %c0_13 = arith.constant 0 : index
    %c9984 = arith.constant 9984 : index
    %25 = vector.load %arg1[%c0_13, %c9984] : memref<2x37632xf32, #tpu.memory_space<vmem>>, vector<2x768xf32>
    %26 = arith.addf %24, %25 : vector<2x768xf32>
    %c0_14 = arith.constant 0 : index
    %c10752 = arith.constant 10752 : index
    %27 = vector.load %arg1[%c0_14, %c10752] : memref<2x37632xf32, #tpu.memory_space<vmem>>, vector<2x768xf32>
    %28 = arith.addf %26, %27 : vector<2x768xf32>
    %c0_15 = arith.constant 0 : index
    %c11520 = arith.constant 11520 : index
    %29 = vector.load %arg1[%c0_15, %c11520] : memref<2x37632xf32, #tpu.memory_space<vmem>>, vector<2x768xf32>
    %30 = arith.addf %28, %29 : vector<2x768xf32>
    %c0_16 = arith.constant 0 : index
    %c12288 = arith.constant 12288 : index
    %31 = vector.load %arg1[%c0_16, %c12288] : memref<2x37632xf32, #tpu.memory_space<vmem>>, vector<2x768xf32>
    %32 = arith.addf %30, %31 : vector<2x768xf32>
    %c0_17 = arith.constant 0 : index
    %c13056 = arith.constant 13056 : index
    %33 = vector.load %arg1[%c0_17, %c13056] : memref<2x37632xf32, #tpu.memory_space<vmem>>, vector<2x768xf32>
    %34 = arith.addf %32, %33 : vector<2x768xf32>
    %c0_18 = arith.constant 0 : index
    %c13824 = arith.constant 13824 : index
    %35 = vector.load %arg1[%c0_18, %c13824] : memref<2x37632xf32, #tpu.memory_space<vmem>>, vector<2x768xf32>
    %36 = arith.addf %34, %35 : vector<2x768xf32>
    %c0_19 = arith.constant 0 : index
    %c14592 = arith.constant 14592 : index
    %37 = vector.load %arg1[%c0_19, %c14592] : memref<2x37632xf32, #tpu.memory_space<vmem>>, vector<2x768xf32>
    %38 = arith.addf %36, %37 : vector<2x768xf32>
    %c0_20 = arith.constant 0 : index
    %c15360 = arith.constant 15360 : index
    %39 = vector.load %arg1[%c0_20, %c15360] : memref<2x37632xf32, #tpu.memory_space<vmem>>, vector<2x768xf32>
    %40 = arith.addf %38, %39 : vector<2x768xf32>
    %c0_21 = arith.constant 0 : index
    %c16128 = arith.constant 16128 : index
    %41 = vector.load %arg1[%c0_21, %c16128] : memref<2x37632xf32, #tpu.memory_space<vmem>>, vector<2x768xf32>
    %42 = arith.addf %40, %41 : vector<2x768xf32>
    %c0_22 = arith.constant 0 : index
    %c16896 = arith.constant 16896 : index
    %43 = vector.load %arg1[%c0_22, %c16896] : memref<2x37632xf32, #tpu.memory_space<vmem>>, vector<2x768xf32>
    %44 = arith.addf %42, %43 : vector<2x768xf32>
    %c0_23 = arith.constant 0 : index
    %c17664 = arith.constant 17664 : index
    %45 = vector.load %arg1[%c0_23, %c17664] : memref<2x37632xf32, #tpu.memory_space<vmem>>, vector<2x768xf32>
    %46 = arith.addf %44, %45 : vector<2x768xf32>
    %c0_24 = arith.constant 0 : index
    %c18432 = arith.constant 18432 : index
    %47 = vector.load %arg1[%c0_24, %c18432] : memref<2x37632xf32, #tpu.memory_space<vmem>>, vector<2x768xf32>
    %48 = arith.addf %46, %47 : vector<2x768xf32>
    %c0_25 = arith.constant 0 : index
    %c19200 = arith.constant 19200 : index
    %49 = vector.load %arg1[%c0_25, %c19200] : memref<2x37632xf32, #tpu.memory_space<vmem>>, vector<2x768xf32>
    %50 = arith.addf %48, %49 : vector<2x768xf32>
    %c0_26 = arith.constant 0 : index
    %c19968 = arith.constant 19968 : index
    %51 = vector.load %arg1[%c0_26, %c19968] : memref<2x37632xf32, #tpu.memory_space<vmem>>, vector<2x768xf32>
    %52 = arith.addf %50, %51 : vector<2x768xf32>
    %c0_27 = arith.constant 0 : index
    %c20736 = arith.constant 20736 : index
    %53 = vector.load %arg1[%c0_27, %c20736] : memref<2x37632xf32, #tpu.memory_space<vmem>>, vector<2x768xf32>
    %54 = arith.addf %52, %53 : vector<2x768xf32>
    %c0_28 = arith.constant 0 : index
    %c21504 = arith.constant 21504 : index
    %55 = vector.load %arg1[%c0_28, %c21504] : memref<2x37632xf32, #tpu.memory_space<vmem>>, vector<2x768xf32>
    %56 = arith.addf %54, %55 : vector<2x768xf32>
    %c0_29 = arith.constant 0 : index
    %c22272 = arith.constant 22272 : index
    %57 = vector.load %arg1[%c0_29, %c22272] : memref<2x37632xf32, #tpu.memory_space<vmem>>, vector<2x768xf32>
    %58 = arith.addf %56, %57 : vector<2x768xf32>
    %c0_30 = arith.constant 0 : index
    %c23040 = arith.constant 23040 : index
    %59 = vector.load %arg1[%c0_30, %c23040] : memref<2x37632xf32, #tpu.memory_space<vmem>>, vector<2x768xf32>
    %60 = arith.addf %58, %59 : vector<2x768xf32>
    %c0_31 = arith.constant 0 : index
    %c23808 = arith.constant 23808 : index
    %61 = vector.load %arg1[%c0_31, %c23808] : memref<2x37632xf32, #tpu.memory_space<vmem>>, vector<2x768xf32>
    %62 = arith.addf %60, %61 : vector<2x768xf32>
    %c0_32 = arith.constant 0 : index
    %c24576 = arith.constant 24576 : index
    %63 = vector.load %arg1[%c0_32, %c24576] : memref<2x37632xf32, #tpu.memory_space<vmem>>, vector<2x768xf32>
    %64 = arith.addf %62, %63 : vector<2x768xf32>
    %c0_33 = arith.constant 0 : index
    %c25344 = arith.constant 25344 : index
    %65 = vector.load %arg1[%c0_33, %c25344] : memref<2x37632xf32, #tpu.memory_space<vmem>>, vector<2x768xf32>
    %66 = arith.addf %64, %65 : vector<2x768xf32>
    %c0_34 = arith.constant 0 : index
    %c26112 = arith.constant 26112 : index
    %67 = vector.load %arg1[%c0_34, %c26112] : memref<2x37632xf32, #tpu.memory_space<vmem>>, vector<2x768xf32>
    %68 = arith.addf %66, %67 : vector<2x768xf32>
    %c0_35 = arith.constant 0 : index
    %c26880 = arith.constant 26880 : index
    %69 = vector.load %arg1[%c0_35, %c26880] : memref<2x37632xf32, #tpu.memory_space<vmem>>, vector<2x768xf32>
    %70 = arith.addf %68, %69 : vector<2x768xf32>
    %c0_36 = arith.constant 0 : index
    %c27648 = arith.constant 27648 : index
    %71 = vector.load %arg1[%c0_36, %c27648] : memref<2x37632xf32, #tpu.memory_space<vmem>>, vector<2x768xf32>
    %72 = arith.addf %70, %71 : vector<2x768xf32>
    %c0_37 = arith.constant 0 : index
    %c28416 = arith.constant 28416 : index
    %73 = vector.load %arg1[%c0_37, %c28416] : memref<2x37632xf32, #tpu.memory_space<vmem>>, vector<2x768xf32>
    %74 = arith.addf %72, %73 : vector<2x768xf32>
    %c0_38 = arith.constant 0 : index
    %c29184 = arith.constant 29184 : index
    %75 = vector.load %arg1[%c0_38, %c29184] : memref<2x37632xf32, #tpu.memory_space<vmem>>, vector<2x768xf32>
    %76 = arith.addf %74, %75 : vector<2x768xf32>
    %c0_39 = arith.constant 0 : index
    %c29952 = arith.constant 29952 : index
    %77 = vector.load %arg1[%c0_39, %c29952] : memref<2x37632xf32, #tpu.memory_space<vmem>>, vector<2x768xf32>
    %78 = arith.addf %76, %77 : vector<2x768xf32>
    %c0_40 = arith.constant 0 : index
    %c30720 = arith.constant 30720 : index
    %79 = vector.load %arg1[%c0_40, %c30720] : memref<2x37632xf32, #tpu.memory_space<vmem>>, vector<2x768xf32>
    %80 = arith.addf %78, %79 : vector<2x768xf32>
    %c0_41 = arith.constant 0 : index
    %c31488 = arith.constant 31488 : index
    %81 = vector.load %arg1[%c0_41, %c31488] : memref<2x37632xf32, #tpu.memory_space<vmem>>, vector<2x768xf32>
    %82 = arith.addf %80, %81 : vector<2x768xf32>
    %c0_42 = arith.constant 0 : index
    %c32256 = arith.constant 32256 : index
    %83 = vector.load %arg1[%c0_42, %c32256] : memref<2x37632xf32, #tpu.memory_space<vmem>>, vector<2x768xf32>
    %84 = arith.addf %82, %83 : vector<2x768xf32>
    %c0_43 = arith.constant 0 : index
    %c33024 = arith.constant 33024 : index
    %85 = vector.load %arg1[%c0_43, %c33024] : memref<2x37632xf32, #tpu.memory_space<vmem>>, vector<2x768xf32>
    %86 = arith.addf %84, %85 : vector<2x768xf32>
    %c0_44 = arith.constant 0 : index
    %c33792 = arith.constant 33792 : index
    %87 = vector.load %arg1[%c0_44, %c33792] : memref<2x37632xf32, #tpu.memory_space<vmem>>, vector<2x768xf32>
    %88 = arith.addf %86, %87 : vector<2x768xf32>
    %c0_45 = arith.constant 0 : index
    %c34560 = arith.constant 34560 : index
    %89 = vector.load %arg1[%c0_45, %c34560] : memref<2x37632xf32, #tpu.memory_space<vmem>>, vector<2x768xf32>
    %90 = arith.addf %88, %89 : vector<2x768xf32>
    %c0_46 = arith.constant 0 : index
    %c35328 = arith.constant 35328 : index
    %91 = vector.load %arg1[%c0_46, %c35328] : memref<2x37632xf32, #tpu.memory_space<vmem>>, vector<2x768xf32>
    %92 = arith.addf %90, %91 : vector<2x768xf32>
    %c0_47 = arith.constant 0 : index
    %c36096 = arith.constant 36096 : index
    %93 = vector.load %arg1[%c0_47, %c36096] : memref<2x37632xf32, #tpu.memory_space<vmem>>, vector<2x768xf32>
    %94 = arith.addf %92, %93 : vector<2x768xf32>
    %c0_48 = arith.constant 0 : index
    %c36864 = arith.constant 36864 : index
    %95 = vector.load %arg1[%c0_48, %c36864] : memref<2x37632xf32, #tpu.memory_space<vmem>>, vector<2x768xf32>
    %96 = arith.addf %94, %95 : vector<2x768xf32>
    %c0_49 = arith.constant 0 : index
    %c0_50 = arith.constant 0 : index
    %97 = vector.load %arg2[%c0_49, %c0_50] : memref<768x128xf32, #tpu.memory_space<vmem>>, vector<768x128xf32>
    %cst = arith.constant dense<0.000000e+00> : vector<2x128xf32>
    %98 = tpu.matmul %96, %97, %cst {dimension_numbers = #tpu.dot_dimension_numbers<[1], [0], [0], [1], [0, 0, 1, 1], [], []>} : vector<2x768xf32>, vector<768x128xf32>, vector<2x128xf32> -> vector<2x128xf32>
    %c0_51 = arith.constant 0 : index
    %c0_52 = arith.constant 0 : index
    %99 = vector.load %arg3[%c0_51, %c0_52] : memref<1x128xf32, #tpu.memory_space<vmem>>, vector<1x128xf32>
    %100 = vector.broadcast %99 : vector<1x128xf32> to vector<2x128xf32>
    %101 = arith.addf %98, %100 : vector<2x128xf32>
    %c0_53 = arith.constant 0 : index
    %c0_54 = arith.constant 0 : index
    %102 = vector.load %arg4[%c0_53, %c0_54] : memref<2x128xf32, #tpu.memory_space<vmem>>, vector<2x128xf32>
    tpu.vector_store %arg4[%c0_53, %c0_54], %101 {strides = array<i32>} : memref<2x128xf32, #tpu.memory_space<vmem>>, vector<2x128xf32>,
    return
  }
  func.func @transform_0(%arg0: i32) -> (i32, i32) {
    %c0_i32 = arith.constant 0 : i32
    %c0_i32_0 = arith.constant 0 : i32
    return %arg0, %c0_i32 : i32, i32
  }
  func.func @transform_1(%arg0: i32) -> (i32, i32) {
    %c0_i32 = arith.constant 0 : i32
    %c0_i32_0 = arith.constant 0 : i32
    %c0_i32_1 = arith.constant 0 : i32
    return %c0_i32, %c0_i32_0 : i32, i32
  }
  func.func @transform_2(%arg0: i32) -> (i32, i32) {
    %c0_i32 = arith.constant 0 : i32
    %c0_i32_0 = arith.constant 0 : i32
    %c0_i32_1 = arith.constant 0 : i32
    return %c0_i32, %c0_i32_0 : i32, i32
  }
  func.func @transform_3(%arg0: i32) -> (i32, i32) {
    %c0_i32 = arith.constant 0 : i32
    %c0_i32_0 = arith.constant 0 : i32
    return %arg0, %c0_i32 : i32, i32
  }
}

</mosaic_0001>

<llo_original>
// kernel: tpu_custom_call.1
$region0: #{tpu_custom_call.1}
  #allocation0 [shape = 'u32[]', space=smem, size = 0x4, offset = 0x4, fixed_abs, tag = 'smem constant byte address 0x4 - core index']
  #allocation1 [shape = 'u32[144,128]{1,0:T(1,128)}', space=vmem, size = 0x12000, scoped, tag = 'internal scratch']
  %s0 = inlined_call_operand.hbm [shape: f32[2,37632], index: 0, kind: input, shape index: {}]
  %s1 = inlined_call_operand.hbm [shape: f32[768,128], index: 1, kind: input, shape index: {}]
  %s2 = inlined_call_operand.vmem [shape: f32[1,128], index: 2, kind: input, shape index: {}]
  %s3 = inlined_call_operand.hbm [shape: f32[2,128], index: 3, kind: output, shape index: {}]
  %s4 = sld [smem:[#allocation0]]
  $region30: #{tpu_custom_call.1} parent=0
    _
  %s6 = ssub.s32 1, %s4
  %s7 = scalar_select 0, %s6, %s4
  $region1: #{tpu_custom_call.1} parent=0
    #allocation2 [shape = 'u8[301056]{0}', space=vmem, size = 0x49800, scoped, tag = 'input window, operand 0, single buffered']
    #allocation3 [shape = 's32[1]{0}', space=sflag, size = 0x4, scoped, tag = 'scoped memory for tpu_custom_call.1']
    #allocation4 [shape = 's32[1]{0}', space=sflag, size = 0x4, scoped, tag = 'scoped memory for tpu_custom_call.1']
    #allocation5 [shape = 'u8[393216]{0}', space=vmem, size = 0x60000, scoped, tag = 'input window, operand 1, single buffered']
    #allocation6 [shape = 's32[1]{0}', space=sflag, size = 0x4, scoped, tag = 'scoped memory for tpu_custom_call.1']
    #allocation7 [shape = 'u8[1024]{0}', space=vmem, size = 0x400, scoped, tag = 'output window, operand 0, single buffered']
    %8 = vsyncpa [#allocation3], 0
    %9 = vsyncpa [#allocation6], 0
    %10 = vsyncpa [#allocation4], 0
    // Predicated region
    $region2: #{tpu_custom_call.1} parent=1 // pred_check
      _
    $region3: #{tpu_custom_call.1} parent=1 // pred_check_branch
      %12 = sbr.rel (0) target = $region5
    $region4: #{tpu_custom_call.1} parent=1 // pred_region
      %s14 = ssub.s32 9408, 9408
      %15 = vsyncadd [#allocation3], %s14
      %s17 = sshll.u32 [#allocation2], 4
      %s18 = int_to_ptr.vmem [resolvable:$true] %s17
      %20 = dma.hbm_to_vmem [thread:$0]  %s0, 9408, %s18, [#allocation3]
    $region5: #{tpu_custom_call.1} parent=1 // pred_fallthru
      _
    // Predicated region
    $region6: #{tpu_custom_call.1} parent=1 // pred_check
      _
    $region7: #{tpu_custom_call.1} parent=1 // pred_check_branch
      %22 = sbr.rel (0) target = $region9
    $region8: #{tpu_custom_call.1} parent=1 // pred_region
      %s24 = ssub.s32 12288, 12288
      %25 = vsyncadd [#allocation6], %s24
      %s26 = sshll.u32 [#allocation5], 4
      %s27 = int_to_ptr.vmem [resolvable:$true] %s26
      %32 = dma.hbm_to_vmem [thread:$0]  %s1, 12288, %s27, [#allocation6], 128, 128, 8
    $region9: #{tpu_custom_call.1} parent=1 // pred_fallthru
      _
    // Predicated region
    $region10: #{tpu_custom_call.1} parent=1 // pred_check
      _
    $region11: #{tpu_custom_call.1} parent=1 // pred_check_branch
      %34 = sbr.rel (0) target = $region13
    $region12: #{tpu_custom_call.1} parent=1 // pred_region
      _
    $region13: #{tpu_custom_call.1} parent=1 // pred_fallthru
      _
    // Predicated region
    $region14: #{tpu_custom_call.1} parent=1 // pred_check
      _
    $region15: #{tpu_custom_call.1} parent=1 // pred_check_branch
      %36 = sbr.rel (0) target = $region17
    $region16: #{tpu_custom_call.1} parent=1 // pred_region
      %37 = dma.done [#allocation3], 9408
    $region17: #{tpu_custom_call.1} parent=1 // pred_fallthru
      _
    // Predicated region
    $region18: #{tpu_custom_call.1} parent=1 // pred_check
      _
    $region19: #{tpu_custom_call.1} parent=1 // pred_check_branch
      %39 = sbr.rel (0) target = $region21
    $region20: #{tpu_custom_call.1} parent=1 // pred_region
      %40 = dma.done [#allocation6], 12288
    $region21: #{tpu_custom_call.1} parent=1 // pred_fallthru
      _
    %v41 = vld [vmem:[#allocation2] sm:$0xff]
    %v42 = vld [vmem:[#allocation2 + $0x8] sm:$0xf]
    %v43 = vld [vmem:[#allocation2 + $0xc] sm:$0xff]
    %v44 = vld [vmem:[#allocation2 + $0x14] sm:$0xf]
    %v45 = vadd.f32 %v41, %v43
    %v46 = vadd.f32 %v42, %v44
    %v47 = vld [vmem:[#allocation2 + $0x18] sm:$0xff]
    %v48 = vld [vmem:[#allocation2 + $0x20] sm:$0xf]
    %v49 = vadd.f32 %v45, %v47
    %v50 = vadd.f32 %v46, %v48
    %v51 = vld [vmem:[#allocation2 + $0x24] sm:$0xff]
    %v52 = vld [vmem:[#allocation2 + $0x2c] sm:$0xf]
    %v53 = vadd.f32 %v49, %v51
    %v54 = vadd.f32 %v50, %v52
    %v55 = vld [vmem:[#allocation2 + $0x30] sm:$0xff]
    %v56 = vld [vmem:[#allocation2 + $0x38] sm:$0xf]
    %v57 = vadd.f32 %v53, %v55
    %v58 = vadd.f32 %v54, %v56
    %v59 = vld [vmem:[#allocation2 + $0x3c] sm:$0xff]
    %v60 = vld [vmem:[#allocation2 + $0x44] sm:$0xf]
    %v61 = vadd.f32 %v57, %v59
    %v62 = vadd.f32 %v58, %v60
    %v63 = vld [vmem:[#allocation2 + $0x48] sm:$0xff]
    %v64 = vld [vmem:[#allocation2 + $0x50] sm:$0xf]
    %v65 = vadd.f32 %v61, %v63
    %v66 = vadd.f32 %v62, %v64
    %v67 = vld [vmem:[#allocation2 + $0x54] sm:$0xff]
    %v68 = vld [vmem:[#allocation2 + $0x5c] sm:$0xf]
    %v69 = vadd.f32 %v65, %v67
    %v70 = vadd.f32 %v66, %v68
    %v71 = vld [vmem:[#allocation2 + $0x60] sm:$0xff]
    %v72 = vld [vmem:[#allocation2 + $0x68] sm:$0xf]
    %v73 = vadd.f32 %v69, %v71
    %v74 = vadd.f32 %v70, %v72
    %v75 = vld [vmem:[#allocation2 + $0x6c] sm:$0xff]
    %v76 = vld [vmem:[#allocation2 + $0x74] sm:$0xf]
    %v77 = vadd.f32 %v73, %v75
    %v78 = vadd.f32 %v74, %v76
    %v79 = vld [vmem:[#allocation2 + $0x78] sm:$0xff]
    %v80 = vld [vmem:[#allocation2 + $0x80] sm:$0xf]
    %v81 = vadd.f32 %v77, %v79
    %v82 = vadd.f32 %v78, %v80
    %v83 = vld [vmem:[#allocation2 + $0x84] sm:$0xff]
    %v84 = vld [vmem:[#allocation2 + $0x8c] sm:$0xf]
    %v85 = vadd.f32 %v81, %v83
    %v86 = vadd.f32 %v82, %v84
    %v87 = vld [vmem:[#allocation2 + $0x90] sm:$0xff]
    %v88 = vld [vmem:[#allocation2 + $0x98] sm:$0xf]
    %v89 = vadd.f32 %v85, %v87
    %v90 = vadd.f32 %v86, %v88
    %v91 = vld [vmem:[#allocation2 + $0x9c] sm:$0xff]
    %v92 = vld [vmem:[#allocation2 + $0xa4] sm:$0xf]
    %v93 = vadd.f32 %v89, %v91
    %v94 = vadd.f32 %v90, %v92
    %v95 = vld [vmem:[#allocation2 + $0xa8] sm:$0xff]
    %v96 = vld [vmem:[#allocation2 + $0xb0] sm:$0xf]
    %v97 = vadd.f32 %v93, %v95
    %v98 = vadd.f32 %v94, %v96
    %v99 = vld [vmem:[#allocation2 + $0xb4] sm:$0xff]
    %v100 = vld [vmem:[#allocation2 + $0xbc] sm:$0xf]
    %v101 = vadd.f32 %v97, %v99
    %v102 = vadd.f32 %v98, %v100
    %v103 = vld [vmem:[#allocation2 + $0xc0] sm:$0xff]
    %v104 = vld [vmem:[#allocation2 + $0xc8] sm:$0xf]
    %v105 = vadd.f32 %v101, %v103
    %v106 = vadd.f32 %v102, %v104
    %v107 = vld [vmem:[#allocation2 + $0xcc] sm:$0xff]
    %v108 = vld [vmem:[#allocation2 + $0xd4] sm:$0xf]
    %v109 = vadd.f32 %v105, %v107
    %v110 = vadd.f32 %v106, %v108
    %v111 = vld [vmem:[#allocation2 + $0xd8] sm:$0xff]
    %v112 = vld [vmem:[#allocation2 + $0xe0] sm:$0xf]
    %v113 = vadd.f32 %v109, %v111
    %v114 = vadd.f32 %v110, %v112
    %v115 = vld [vmem:[#allocation2 + $0xe4] sm:$0xff]
    %v116 = vld [vmem:[#allocation2 + $0xec] sm:$0xf]
    %v117 = vadd.f32 %v113, %v115
    %v118 = vadd.f32 %v114, %v116
    %v119 = vld [vmem:[#allocation2 + $0xf0] sm:$0xff]
    %v120 = vld [vmem:[#allocation2 + $0xf8] sm:$0xf]
    %v121 = vadd.f32 %v117, %v119
    %v122 = vadd.f32 %v118, %v120
    %v123 = vld [vmem:[#allocation2 + $0xfc] sm:$0xff]
    %v124 = vld [vmem:[#allocation2 + $0x104] sm:$0xf]
    %v125 = vadd.f32 %v121, %v123
    %v126 = vadd.f32 %v122, %v124
    %v127 = vld [vmem:[#allocation2 + $0x108] sm:$0xff]
    %v128 = vld [vmem:[#allocation2 + $0x110] sm:$0xf]
    %v129 = vadd.f32 %v125, %v127
    %v130 = vadd.f32 %v126, %v128
    %v131 = vld [vmem:[#allocation2 + $0x114] sm:$0xff]
    %v132 = vld [vmem:[#allocation2 + $0x11c] sm:$0xf]
    %v133 = vadd.f32 %v129, %v131
    %v134 = vadd.f32 %v130, %v132
    %v135 = vld [vmem:[#allocation2 + $0x120] sm:$0xff]
    %v136 = vld [vmem:[#allocation2 + $0x128] sm:$0xf]
    %v137 = vadd.f32 %v133, %v135
    %v138 = vadd.f32 %v134, %v136
    %v139 = vld [vmem:[#allocation2 + $0x12c] sm:$0xff]
    %v140 = vld [vmem:[#allocation2 + $0x134] sm:$0xf]
    %v141 = vadd.f32 %v137, %v139
    %v142 = vadd.f32 %v138, %v140
    %v143 = vld [vmem:[#allocation2 + $0x138] sm:$0xff]
    %v144 = vld [vmem:[#allocation2 + $0x140] sm:$0xf]
    %v145 = vadd.f32 %v141, %v143
    %v146 = vadd.f32 %v142, %v144
    %v147 = vld [vmem:[#allocation2 + $0x144] sm:$0xff]
    %v148 = vld [vmem:[#allocation2 + $0x14c] sm:$0xf]
    %v149 = vadd.f32 %v145, %v147
    %v150 = vadd.f32 %v146, %v148
    %v151 = vld [vmem:[#allocation2 + $0x150] sm:$0xff]
    %v152 = vld [vmem:[#allocation2 + $0x158] sm:$0xf]
    %v153 = vadd.f32 %v149, %v151
    %v154 = vadd.f32 %v150, %v152
    %v155 = vld [vmem:[#allocation2 + $0x15c] sm:$0xff]
    %v156 = vld [vmem:[#allocation2 + $0x164] sm:$0xf]
    %v157 = vadd.f32 %v153, %v155
    %v158 = vadd.f32 %v154, %v156
    %v159 = vld [vmem:[#allocation2 + $0x168] sm:$0xff]
    %v160 = vld [vmem:[#allocation2 + $0x170] sm:$0xf]
    %v161 = vadd.f32 %v157, %v159
    %v162 = vadd.f32 %v158, %v160
    %v163 = vld [vmem:[#allocation2 + $0x174] sm:$0xff]
    %v164 = vld [vmem:[#allocation2 + $0x17c] sm:$0xf]
    %v165 = vadd.f32 %v161, %v163
    %v166 = vadd.f32 %v162, %v164
    %v167 = vld [vmem:[#allocation2 + $0x180] sm:$0xff]
    %v168 = vld [vmem:[#allocation2 + $0x188] sm:$0xf]
    %v169 = vadd.f32 %v165, %v167
    %v170 = vadd.f32 %v166, %v168
    %v171 = vld [vmem:[#allocation2 + $0x18c] sm:$0xff]
    %v172 = vld [vmem:[#allocation2 + $0x194] sm:$0xf]
    %v173 = vadd.f32 %v169, %v171
    %v174 = vadd.f32 %v170, %v172
    %v175 = vld [vmem:[#allocation2 + $0x198] sm:$0xff]
    %v176 = vld [vmem:[#allocation2 + $0x1a0] sm:$0xf]
    %v177 = vadd.f32 %v173, %v175
    %v178 = vadd.f32 %v174, %v176
    %v179 = vld [vmem:[#allocation2 + $0x1a4] sm:$0xff]
    %v180 = vld [vmem:[#allocation2 + $0x1ac] sm:$0xf]
    %v181 = vadd.f32 %v177, %v179
    %v182 = vadd.f32 %v178, %v180
    %v183 = vld [vmem:[#allocation2 + $0x1b0] sm:$0xff]
    %v184 = vld [vmem:[#allocation2 + $0x1b8] sm:$0xf]
    %v185 = vadd.f32 %v181, %v183
    %v186 = vadd.f32 %v182, %v184
    %v187 = vld [vmem:[#allocation2 + $0x1bc] sm:$0xff]
    %v188 = vld [vmem:[#allocation2 + $0x1c4] sm:$0xf]
    %v189 = vadd.f32 %v185, %v187
    %v190 = vadd.f32 %v186, %v188
    %v191 = vld [vmem:[#allocation2 + $0x1c8] sm:$0xff]
    %v192 = vld [vmem:[#allocation2 + $0x1d0] sm:$0xf]
    %v193 = vadd.f32 %v189, %v191
    %v194 = vadd.f32 %v190, %v192
    %v195 = vld [vmem:[#allocation2 + $0x1d4] sm:$0xff]
    %v196 = vld [vmem:[#allocation2 + $0x1dc] sm:$0xf]
    %v197 = vadd.f32 %v193, %v195
    %v198 = vadd.f32 %v194, %v196
    %v199 = vld [vmem:[#allocation2 + $0x1e0] sm:$0xff]
    %v200 = vld [vmem:[#allocation2 + $0x1e8] sm:$0xf]
    %v201 = vadd.f32 %v197, %v199
    %v202 = vadd.f32 %v198, %v200
    %v203 = vld [vmem:[#allocation2 + $0x1ec] sm:$0xff]
    %v204 = vld [vmem:[#allocation2 + $0x1f4] sm:$0xf]
    %v205 = vadd.f32 %v201, %v203
    %v206 = vadd.f32 %v202, %v204
    %v207 = vld [vmem:[#allocation2 + $0x1f8] sm:$0xff]
    %v208 = vld [vmem:[#allocation2 + $0x200] sm:$0xf]
    %v209 = vadd.f32 %v205, %v207
    %v210 = vadd.f32 %v206, %v208
    %v211 = vld [vmem:[#allocation2 + $0x204] sm:$0xff]
    %v212 = vld [vmem:[#allocation2 + $0x20c] sm:$0xf]
    %v213 = vadd.f32 %v209, %v211
    %v214 = vadd.f32 %v210, %v212
    %v215 = vld [vmem:[#allocation2 + $0x210] sm:$0xff]
    %v216 = vld [vmem:[#allocation2 + $0x218] sm:$0xf]
    %v217 = vadd.f32 %v213, %v215
    %v218 = vadd.f32 %v214, %v216
    %v219 = vld [vmem:[#allocation2 + $0x21c] sm:$0xff]
    %v220 = vld [vmem:[#allocation2 + $0x224] sm:$0xf]
    %v221 = vadd.f32 %v217, %v219
    %v222 = vadd.f32 %v218, %v220
    %v223 = vld [vmem:[#allocation2 + $0x228] sm:$0xff]
    %v224 = vld [vmem:[#allocation2 + $0x230] sm:$0xf]
    %v225 = vadd.f32 %v221, %v223
    %v226 = vadd.f32 %v222, %v224
    %v227 = vld [vmem:[#allocation2 + $0x234] sm:$0xff]
    %v228 = vld [vmem:[#allocation2 + $0x23c] sm:$0xf]
    %v229 = vadd.f32 %v225, %v227
    %v230 = vadd.f32 %v226, %v228
    %v231 = vld [vmem:[#allocation2 + $0x240] sm:$0xff]
    %v232 = vld [vmem:[#allocation2 + $0x248] sm:$0xf]
    %v233 = vadd.f32 %v229, %v231
    %v234 = vadd.f32 %v230, %v232
    %v235 = vld [vmem:[#allocation5] sm:$0xff]
    %v236 = vld [vmem:[#allocation5 + $0x8] sm:$0xff]
    %v237 = vld [vmem:[#allocation5 + $0x10] sm:$0xff]
    %v238 = vld [vmem:[#allocation5 + $0x18] sm:$0xff]
    %v239 = vld [vmem:[#allocation5 + $0x20] sm:$0xff]
    %v240 = vld [vmem:[#allocation5 + $0x28] sm:$0xff]
    %v241 = vld [vmem:[#allocation5 + $0x30] sm:$0xff]
    %v242 = vld [vmem:[#allocation5 + $0x38] sm:$0xff]
    %v243 = vld [vmem:[#allocation5 + $0x40] sm:$0xff]
    %v244 = vld [vmem:[#allocation5 + $0x48] sm:$0xff]
    %v245 = vld [vmem:[#allocation5 + $0x50] sm:$0xff]
    %v246 = vld [vmem:[#allocation5 + $0x58] sm:$0xff]
    %v247 = vld [vmem:[#allocation5 + $0x60] sm:$0xff]
    %v248 = vld [vmem:[#allocation5 + $0x68] sm:$0xff]
    %v249 = vld [vmem:[#allocation5 + $0x70] sm:$0xff]
    %v250 = vld [vmem:[#allocation5 + $0x78] sm:$0xff]
    %v251 = vld [vmem:[#allocation5 + $0x80] sm:$0xff]
    %v252 = vld [vmem:[#allocation5 + $0x88] sm:$0xff]
    %v253 = vld [vmem:[#allocation5 + $0x90] sm:$0xff]
    %v254 = vld [vmem:[#allocation5 + $0x98] sm:$0xff]
    %v255 = vld [vmem:[#allocation5 + $0xa0] sm:$0xff]
    %v256 = vld [vmem:[#allocation5 + $0xa8] sm:$0xff]
    %v257 = vld [vmem:[#allocation5 + $0xb0] sm:$0xff]
    %v258 = vld [vmem:[#allocation5 + $0xb8] sm:$0xff]
    %v259 = vld [vmem:[#allocation5 + $0xc0] sm:$0xff]
    %v260 = vld [vmem:[#allocation5 + $0xc8] sm:$0xff]
    %v261 = vld [vmem:[#allocation5 + $0xd0] sm:$0xff]
    %v262 = vld [vmem:[#allocation5 + $0xd8] sm:$0xff]
    %v263 = vld [vmem:[#allocation5 + $0xe0] sm:$0xff]
    %v264 = vld [vmem:[#allocation5 + $0xe8] sm:$0xff]
    %v265 = vld [vmem:[#allocation5 + $0xf0] sm:$0xff]
    %v266 = vld [vmem:[#allocation5 + $0xf8] sm:$0xff]
    %v267 = vld [vmem:[#allocation5 + $0x100] sm:$0xff]
    %v268 = vld [vmem:[#allocation5 + $0x108] sm:$0xff]
    %v269 = vld [vmem:[#allocation5 + $0x110] sm:$0xff]
    %v270 = vld [vmem:[#allocation5 + $0x118] sm:$0xff]
    %v271 = vld [vmem:[#allocation5 + $0x120] sm:$0xff]
    %v272 = vld [vmem:[#allocation5 + $0x128] sm:$0xff]
    %v273 = vld [vmem:[#allocation5 + $0x130] sm:$0xff]
    %v274 = vld [vmem:[#allocation5 + $0x138] sm:$0xff]
    %v275 = vld [vmem:[#allocation5 + $0x140] sm:$0xff]
    %v276 = vld [vmem:[#allocation5 + $0x148] sm:$0xff]
    %v277 = vld [vmem:[#allocation5 + $0x150] sm:$0xff]
    %v278 = vld [vmem:[#allocation5 + $0x158] sm:$0xff]
    %v279 = vld [vmem:[#allocation5 + $0x160] sm:$0xff]
    %v280 = vld [vmem:[#allocation5 + $0x168] sm:$0xff]
    %v281 = vld [vmem:[#allocation5 + $0x170] sm:$0xff]
    %v282 = vld [vmem:[#allocation5 + $0x178] sm:$0xff]
    %v283 = vld [vmem:[#allocation5 + $0x180] sm:$0xff]
    %v284 = vld [vmem:[#allocation5 + $0x188] sm:$0xff]
    %v285 = vld [vmem:[#allocation5 + $0x190] sm:$0xff]
    %v286 = vld [vmem:[#allocation5 + $0x198] sm:$0xff]
    %v287 = vld [vmem:[#allocation5 + $0x1a0] sm:$0xff]
    %v288 = vld [vmem:[#allocation5 + $0x1a8] sm:$0xff]
    %v289 = vld [vmem:[#allocation5 + $0x1b0] sm:$0xff]
    %v290 = vld [vmem:[#allocation5 + $0x1b8] sm:$0xff]
    %v291 = vld [vmem:[#allocation5 + $0x1c0] sm:$0xff]
    %v292 = vld [vmem:[#allocation5 + $0x1c8] sm:$0xff]
    %v293 = vld [vmem:[#allocation5 + $0x1d0] sm:$0xff]
    %v294 = vld [vmem:[#allocation5 + $0x1d8] sm:$0xff]
    %v295 = vld [vmem:[#allocation5 + $0x1e0] sm:$0xff]
    %v296 = vld [vmem:[#allocation5 + $0x1e8] sm:$0xff]
    %v297 = vld [vmem:[#allocation5 + $0x1f0] sm:$0xff]
    %v298 = vld [vmem:[#allocation5 + $0x1f8] sm:$0xff]
    %v299 = vld [vmem:[#allocation5 + $0x200] sm:$0xff]
    %v300 = vld [vmem:[#allocation5 + $0x208] sm:$0xff]
    %v301 = vld [vmem:[#allocation5 + $0x210] sm:$0xff]
    %v302 = vld [vmem:[#allocation5 + $0x218] sm:$0xff]
    %v303 = vld [vmem:[#allocation5 + $0x220] sm:$0xff]
    %v304 = vld [vmem:[#allocation5 + $0x228] sm:$0xff]
    %v305 = vld [vmem:[#allocation5 + $0x230] sm:$0xff]
    %v306 = vld [vmem:[#allocation5 + $0x238] sm:$0xff]
    %v307 = vld [vmem:[#allocation5 + $0x240] sm:$0xff]
    %v308 = vld [vmem:[#allocation5 + $0x248] sm:$0xff]
    %v309 = vld [vmem:[#allocation5 + $0x250] sm:$0xff]
    %v310 = vld [vmem:[#allocation5 + $0x258] sm:$0xff]
    %v311 = vld [vmem:[#allocation5 + $0x260] sm:$0xff]
    %v312 = vld [vmem:[#allocation5 + $0x268] sm:$0xff]
    %v313 = vld [vmem:[#allocation5 + $0x270] sm:$0xff]
    %v314 = vld [vmem:[#allocation5 + $0x278] sm:$0xff]
    %v315 = vld [vmem:[#allocation5 + $0x280] sm:$0xff]
    %v316 = vld [vmem:[#allocation5 + $0x288] sm:$0xff]
    %v317 = vld [vmem:[#allocation5 + $0x290] sm:$0xff]
    %v318 = vld [vmem:[#allocation5 + $0x298] sm:$0xff]
    %v319 = vld [vmem:[#allocation5 + $0x2a0] sm:$0xff]
    %v320 = vld [vmem:[#allocation5 + $0x2a8] sm:$0xff]
    %v321 = vld [vmem:[#allocation5 + $0x2b0] sm:$0xff]
    %v322 = vld [vmem:[#allocation5 + $0x2b8] sm:$0xff]
    %v323 = vld [vmem:[#allocation5 + $0x2c0] sm:$0xff]
    %v324 = vld [vmem:[#allocation5 + $0x2c8] sm:$0xff]
    %v325 = vld [vmem:[#allocation5 + $0x2d0] sm:$0xff]
    %v326 = vld [vmem:[#allocation5 + $0x2d8] sm:$0xff]
    %v327 = vld [vmem:[#allocation5 + $0x2e0] sm:$0xff]
    %v328 = vld [vmem:[#allocation5 + $0x2e8] sm:$0xff]
    %v329 = vld [vmem:[#allocation5 + $0x2f0] sm:$0xff]
    %v330 = vld [vmem:[#allocation5 + $0x2f8] sm:$0xff]
    %v331 = vld [vmem:[%s2] sm:$0x1]
    %v333 = vlaneseq
    %v334 = vshrl.u32 %v333, 7
    %v335 = vsub.s32 0, %v334
    %v336 = vrot.slane %v331, %v335
    %v340 = vcombine.high %v233, %v233
    %v342 = vunpack.c.l.s4 1983009808
    %v343 = vunpack.c.0.s8 %v342
    %v344 = vlaneseq
    %v345 = vshrl.u32 %v344, 7
    %v346 = vsub.s32 %v343, %v345
    %v347 = vrot.slane %v233, %v346
    %v349 = vunpack.c.l.s4 1983009808
    %v350 = vunpack.c.0.s8 %v349
    %v351 = vlaneseq
    %v352 = vshrl.u32 %v351, 7
    %v353 = vsub.s32 %v350, %v352
    %v354 = vrot.slane %v340, %v353
    %v355 = vcombine.high %v347, %v347
    %v356 = vcombine.high %v354, %v354
    %v358 = vunpack.c.l.s4 1983009808
    %v359 = vunpack.c.0.s8 %v358
    %v360 = vlaneseq
    %v361 = vshrl.u32 %v360, 7
    %v362 = vsub.s32 %v359, %v361
    %v363 = vrot.slane %v234, %v362
    %v364 = vcombine.high %v363, %v363
    %371 = vmatprep.subr.mxu0 0.0
    %372 = vmatpush1.msra.mxu0 %v235
    %373 = vmatprep.subr.mxu0 0.0
    %374 = vmatpush1.msra.mxu0 %v236
    %375 = vmatprep.subr.mxu0 0.0
    %376 = vmatpush1.msra.mxu0 %v237
    %377 = vmatprep.subr.mxu0 0.0
    %378 = vmatpush1.msra.mxu0 %v238
    %379 = vmatprep.subr.mxu0 0.0
    %380 = vmatpush1.msra.mxu0 %v239
    %381 = vmatprep.subr.mxu0 0.0
    %382 = vmatpush1.msra.mxu0 %v240
    %383 = vmatprep.subr.mxu0 0.0
    %384 = vmatpush1.msra.mxu0 %v241
    %385 = vmatprep.subr.mxu0 0.0
    %386 = vmatpush1.msra.mxu0 %v242
    %387 = vmatprep.subr.mxu0 0.0
    %388 = vmatpush1.msra.mxu0 %v243
    %389 = vmatprep.subr.mxu0 0.0
    %390 = vmatpush1.msra.mxu0 %v244
    %391 = vmatprep.subr.mxu0 0.0
    %392 = vmatpush1.msra.mxu0 %v245
    %393 = vmatprep.subr.mxu0 0.0
    %394 = vmatpush1.msra.mxu0 %v246
    %395 = vmatprep.subr.mxu0 0.0
    %396 = vmatpush1.msra.mxu0 %v247
    %397 = vmatprep.subr.mxu0 0.0
    %398 = vmatpush1.msra.mxu0 %v248
    %399 = vmatprep.subr.mxu0 0.0
    %400 = vmatpush1.msra.mxu0 %v249
    %401 = vmatprep.subr.mxu0 0.0
    %402 = vmatpush1.msra.mxu0 %v250
    %403 = vmatprep.subr.mxu0 0.0
    %404 = vmatpush1.msra.mxu0 %v251
    %405 = vmatprep.subr.mxu0 0.0
    %406 = vmatpush1.msra.mxu0 %v252
    %407 = vmatprep.subr.mxu0 0.0
    %408 = vmatpush1.msra.mxu0 %v253
    %409 = vmatprep.subr.mxu0 0.0
    %410 = vmatpush1.msra.mxu0 %v254
    %411 = vmatprep.subr.mxu0 0.0
    %412 = vmatpush1.msra.mxu0 %v255
    %413 = vmatprep.subr.mxu0 0.0
    %414 = vmatpush1.msra.mxu0 %v256
    %415 = vmatprep.subr.mxu0 0.0
    %416 = vmatpush1.msra.mxu0 %v257
    %417 = vmatprep.subr.mxu0 0.0
    %418 = vmatpush1.msra.mxu0 %v258
    %419 = vmatprep.subr.mxu0 0.0
    %420 = vmatpush1.msra.mxu0 %v259
    %421 = vmatprep.subr.mxu0 0.0
    %422 = vmatpush1.msra.mxu0 %v260
    %423 = vmatprep.subr.mxu0 0.0
    %424 = vmatpush1.msra.mxu0 %v261
    %425 = vmatprep.subr.mxu0 0.0
    %426 = vmatpush1.msra.mxu0 %v262
    %427 = vmatprep.subr.mxu0 0.0
    %428 = vmatpush1.msra.mxu0 %v263
    %429 = vmatprep.subr.mxu0 0.0
    %430 = vmatpush1.msra.mxu0 %v264
    %431 = vmatprep.subr.mxu0 0.0
    %432 = vmatpush1.msra.mxu0 %v265
    %433 = vmatprep.subr.mxu0 0.0
    %434 = vmatpush1.msra.mxu0 %v266
    %435 = vmatprep.mubr.f32.mxu0 %v355
    %436 = vmatmul.mubr.f32.gmra.mrb[0].mxu0 %v347
    %v437 = vpop.f32.mrb[0].mxu0
    %v438 = vadd.f32 %v336, %v437
    %v439 = vpop.f32.mrb[0].mxu0
    %440 = vdwg.mxu0
    %441 = vmatprep.subr.mxu0 0.0
    %442 = vmatpush1.msra.mxu0 %v267
    %443 = vmatprep.subr.mxu0 0.0
    %444 = vmatpush1.msra.mxu0 %v268
    %445 = vmatprep.subr.mxu0 0.0
    %446 = vmatpush1.msra.mxu0 %v269
    %447 = vmatprep.subr.mxu0 0.0
    %448 = vmatpush1.msra.mxu0 %v270
    %449 = vmatprep.subr.mxu0 0.0
    %450 = vmatpush1.msra.mxu0 %v271
    %451 = vmatprep.subr.mxu0 0.0
    %452 = vmatpush1.msra.mxu0 %v272
    %453 = vmatprep.subr.mxu0 0.0
    %454 = vmatpush1.msra.mxu0 %v273
    %455 = vmatprep.subr.mxu0 0.0
    %456 = vmatpush1.msra.mxu0 %v274
    %457 = vmatprep.subr.mxu0 0.0
    %458 = vmatpush1.msra.mxu0 %v275
    %459 = vmatprep.subr.mxu0 0.0
    %460 = vmatpush1.msra.mxu0 %v276
    %461 = vmatprep.subr.mxu0 0.0
    %462 = vmatpush1.msra.mxu0 %v277
    %463 = vmatprep.subr.mxu0 0.0
    %464 = vmatpush1.msra.mxu0 %v278
    %465 = vmatprep.subr.mxu0 0.0
    %466 = vmatpush1.msra.mxu0 %v279
    %467 = vmatprep.subr.mxu0 0.0
    %468 = vmatpush1.msra.mxu0 %v280
    %469 = vmatprep.subr.mxu0 0.0
    %470 = vmatpush1.msra.mxu0 %v281
    %471 = vmatprep.subr.mxu0 0.0
    %472 = vmatpush1.msra.mxu0 %v282
    %473 = vmatprep.subr.mxu0 0.0
    %474 = vmatpush1.msra.mxu0 %v283
    %475 = vmatprep.subr.mxu0 0.0
    %476 = vmatpush1.msra.mxu0 %v284
    %477 = vmatprep.subr.mxu0 0.0
    %478 = vmatpush1.msra.mxu0 %v285
    %479 = vmatprep.subr.mxu0 0.0
    %480 = vmatpush1.msra.mxu0 %v286
    %481 = vmatprep.subr.mxu0 0.0
    %482 = vmatpush1.msra.mxu0 %v287
    %483 = vmatprep.subr.mxu0 0.0
    %484 = vmatpush1.msra.mxu0 %v288
    %485 = vmatprep.subr.mxu0 0.0
    %486 = vmatpush1.msra.mxu0 %v289
    %487 = vmatprep.subr.mxu0 0.0
    %488 = vmatpush1.msra.mxu0 %v290
    %489 = vmatprep.subr.mxu0 0.0
    %490 = vmatpush1.msra.mxu0 %v291
    %491 = vmatprep.subr.mxu0 0.0
    %492 = vmatpush1.msra.mxu0 %v292
    %493 = vmatprep.subr.mxu0 0.0
    %494 = vmatpush1.msra.mxu0 %v293
    %495 = vmatprep.subr.mxu0 0.0
    %496 = vmatpush1.msra.mxu0 %v294
    %497 = vmatprep.subr.mxu0 0.0
    %498 = vmatpush1.msra.mxu0 %v295
    %499 = vmatprep.subr.mxu0 0.0
    %500 = vmatpush1.msra.mxu0 %v296
    %501 = vmatprep.subr.mxu0 0.0
    %502 = vmatpush1.msra.mxu0 %v297
    %503 = vmatprep.subr.mxu0 0.0
    %504 = vmatpush1.msra.mxu0 %v298
    %505 = vmatprep.mubr.f32.mxu0 %v356
    %506 = vmatmul.mubr.f32.gmra.mrb[0].mxu0 %v354
    %v507 = vpop.f32.mrb[0].mxu0
    %v508 = vadd.f32 %v438, %v507
    %v509 = vpop.f32.mrb[0].mxu0
    %510 = vdwg.mxu0
    %511 = vmatprep.subr.mxu0 0.0
    %512 = vmatpush1.msra.mxu0 %v299
    %513 = vmatprep.subr.mxu0 0.0
    %514 = vmatpush1.msra.mxu0 %v300
    %515 = vmatprep.subr.mxu0 0.0
    %516 = vmatpush1.msra.mxu0 %v301
    %517 = vmatprep.subr.mxu0 0.0
    %518 = vmatpush1.msra.mxu0 %v302
    %519 = vmatprep.subr.mxu0 0.0
    %520 = vmatpush1.msra.mxu0 %v303
    %521 = vmatprep.subr.mxu0 0.0
    %522 = vmatpush1.msra.mxu0 %v304
    %523 = vmatprep.subr.mxu0 0.0
    %524 = vmatpush1.msra.mxu0 %v305
    %525 = vmatprep.subr.mxu0 0.0
    %526 = vmatpush1.msra.mxu0 %v306
    %527 = vmatprep.subr.mxu0 0.0
    %528 = vmatpush1.msra.mxu0 %v307
    %529 = vmatprep.subr.mxu0 0.0
    %530 = vmatpush1.msra.mxu0 %v308
    %531 = vmatprep.subr.mxu0 0.0
    %532 = vmatpush1.msra.mxu0 %v309
    %533 = vmatprep.subr.mxu0 0.0
    %534 = vmatpush1.msra.mxu0 %v310
    %535 = vmatprep.subr.mxu0 0.0
    %536 = vmatpush1.msra.mxu0 %v311
    %537 = vmatprep.subr.mxu0 0.0
    %538 = vmatpush1.msra.mxu0 %v312
    %539 = vmatprep.subr.mxu0 0.0
    %540 = vmatpush1.msra.mxu0 %v313
    %541 = vmatprep.subr.mxu0 0.0
    %542 = vmatpush1.msra.mxu0 %v314
    %543 = vmatprep.subr.mxu0 0.0
    %544 = vmatpush1.msra.mxu0 %v315
    %545 = vmatprep.subr.mxu0 0.0
    %546 = vmatpush1.msra.mxu0 %v316
    %547 = vmatprep.subr.mxu0 0.0
    %548 = vmatpush1.msra.mxu0 %v317
    %549 = vmatprep.subr.mxu0 0.0
    %550 = vmatpush1.msra.mxu0 %v318
    %551 = vmatprep.subr.mxu0 0.0
    %552 = vmatpush1.msra.mxu0 %v319
    %553 = vmatprep.subr.mxu0 0.0
    %554 = vmatpush1.msra.mxu0 %v320
    %555 = vmatprep.subr.mxu0 0.0
    %556 = vmatpush1.msra.mxu0 %v321
    %557 = vmatprep.subr.mxu0 0.0
    %558 = vmatpush1.msra.mxu0 %v322
    %559 = vmatprep.subr.mxu0 0.0
    %560 = vmatpush1.msra.mxu0 %v323
    %561 = vmatprep.subr.mxu0 0.0
    %562 = vmatpush1.msra.mxu0 %v324
    %563 = vmatprep.subr.mxu0 0.0
    %564 = vmatpush1.msra.mxu0 %v325
    %565 = vmatprep.subr.mxu0 0.0
    %566 = vmatpush1.msra.mxu0 %v326
    %567 = vmatprep.subr.mxu0 0.0
    %568 = vmatpush1.msra.mxu0 %v327
    %569 = vmatprep.subr.mxu0 0.0
    %570 = vmatpush1.msra.mxu0 %v328
    %571 = vmatprep.subr.mxu0 0.0
    %572 = vmatpush1.msra.mxu0 %v329
    %573 = vmatprep.subr.mxu0 0.0
    %574 = vmatpush1.msra.mxu0 %v330
    %575 = vmatprep.mubr.f32.mxu0 %v364
    %576 = vmatmul.mubr.f32.gmra.mrb[0].mxu0 %v363
    %v577 = vpop.f32.mrb[0].mxu0
    %v578 = vadd.f32 %v508, %v577
    %v579 = vpop.f32.mrb[0].mxu0
    %580 = vdwg.mxu0
    %581 = vst [vmem:[#allocation7] sm:$0x3] %v578
    // Predicated region
    $region22: #{tpu_custom_call.1} parent=1 // pred_check
      _
    $region23: #{tpu_custom_call.1} parent=1 // pred_check_branch
      %583 = sbr.rel (0) target = $region25
    $region24: #{tpu_custom_call.1} parent=1 // pred_region
      %s585 = ssub.s32 32, 32
      %586 = vsyncadd [#allocation4], %s585
      %s588 = sshll.u32 [#allocation7], 4
      %s589 = int_to_ptr.vmem [resolvable:$true] %s588
      %591 = dma.vmem_to_hbm [thread:$0]  %s589, 32, %s3, [#allocation4]
    $region25: #{tpu_custom_call.1} parent=1 // pred_fallthru
      _
    // Predicated region
    $region26: #{tpu_custom_call.1} parent=1 // pred_check
      _
    $region27: #{tpu_custom_call.1} parent=1 // pred_check_branch
      %593 = sbr.rel (0) target = $region29
    $region28: #{tpu_custom_call.1} parent=1 // pred_region
      %594 = dma.done [#allocation4], 32
    $region29: #{tpu_custom_call.1} parent=1 // pred_fallthru
      _
    %595 = vsyncpa [#allocation3], 1
    %596 = vsyncpa [#allocation6], 1
    %597 = vsyncpa [#allocation4], 1

</llo_original>
